<compile_context>
chip_gen: v5e
topology: v5e:2x2
jax: 0.10.0
libtpu: 0.0.40
codegen_flags: <defaults>
</compile_context>

<pallas_src>
import jax
import jax.numpy as jnp
from jax.experimental import pallas as pl
from jax.experimental.pallas import tpu as pltpu


def _round_up(n, m):
    return ((n + m - 1) // m) * m


def lossnet_kernel(x_ref, w1t_ref, b1_ref, w2r_ref, b2_ref, o_ref):
    # x:   [TB, C]  f32  (C = 84; streamed, double-buffered by Pallas)
    # w1t: [C, N]   f32  (pre-transposed FC1 weight, VMEM-resident)
    # b1:  [1, N]   f32
    # w2r: [1, N]   f32  (row of the 128 -> 1 Linear weight)
    # b2:  [1]      f32  (SMEM scalar)
    # o:   [TB, 1]  f32
    h = jnp.dot(x_ref[...], w1t_ref[...], preferred_element_type=jnp.float32)
    h = jnp.maximum(h + b1_ref[...], 0.0)  # bias + ReLU on the VPU
    # 128 -> 1 Linear: VPU multiply + lane (XLU) reduction; keeps the MXU free
    # of a degenerate N=1 matmul.
    out = jnp.sum(h * w2r_ref[...], axis=-1, keepdims=True) + b2_ref[0]
    o_ref[...] = out.astype(o_ref.dtype)


def lossnet_mnist_forward(x, w1, b1, w2, b2, *, tb_max=8192):
    """x: [B, 84]; w1: [128, 84]; b1: [128]; w2: [1, 128]; b2: [1] -> [B, 1]."""
    B, C = x.shape
    N = w1.shape[0]  # interm_dim = 128

    orig_dtype = x.dtype
    x = x.astype(jnp.float32)

    # At most pad the batch to a multiple of 8 (sublane granule); no pad to a
    # tile multiple, no K pad, no dtype-cast pass over x.
    B8 = _round_up(B, 8)
    if B8 != B:
        x = jnp.pad(x, ((0, B8 - B), (0, 0)))

    # Batch tile: large enough to amortize the ~0.35us/step grid overhead, but
    # chosen so the grid has >= 2 steps when possible (megacore sharding on
    # v7x). Per-tile footprint at tb=8192: ~2.75 MiB x2 buffers for x plus a
    # ~4 MiB f32 intermediate -> ~10 MiB, inside the 32 MiB limit set below.
    tb = min(tb_max, _round_up(pl.cdiv(B8, 2), 8))
    grid = (pl.cdiv(B8, tb),)

    # --- tiny one-off parameter prep (weights only; never touches x) -------
    w1t = w1.T.astype(jnp.float32)            # [C, N]
    b1r = b1.reshape(1, N).astype(jnp.float32)
    w2r = w2.reshape(1, N).astype(jnp.float32)
    b2s = b2.reshape(1).astype(jnp.float32)   # SMEM scalar

    cost = pl.CostEstimate(
        flops=2 * B8 * C * N + 4 * B8 * N,
        transcendentals=0,
        bytes_accessed=(B8 * C * 4        # x (f32, read once)
                        + C * N * 4       # w1t
                        + 2 * N * 4 + 4   # b1, w2 row, b2
                        + B8 * 4),        # output
    )

    out = pl.pallas_call(
        lossnet_kernel,
        out_shape=jax.ShapeDtypeStruct((B8, 1), jnp.float32),
        grid=grid,
        in_specs=[
            pl.BlockSpec((tb, C), lambda i: (i, 0)),              # x: streamed
            pl.BlockSpec((C, N), lambda i: (0, 0)),               # w1t: resident
            pl.BlockSpec((1, N), lambda i: (0, 0)),               # b1
            pl.BlockSpec((1, N), lambda i: (0, 0)),               # w2 row
            pl.BlockSpec(memory_space=pltpu.MemorySpace.SMEM),    # b2 scalar
        ],
        out_specs=pl.BlockSpec((tb, 1), lambda i: (i, 0)),
        compiler_params=pltpu.CompilerParams(
            dimension_semantics=("parallel",),
            vmem_limit_bytes=32 * 1024 * 1024,
        ),
        cost_estimate=cost,
    )(x, w1t, b1r, w2r, b2s)

    return out[:B].astype(orig_dtype)


def lossnet_mnist_ref(x, w1, b1, w2, b2):
    h = jnp.maximum(x @ w1.T + b1, 0.0)
    return h @ w2.T + b2


if __name__ == "__main__":
    key = jax.random.PRNGKey(0)
    k_x, k_w1, k_b1, k_w2, k_b2 = jax.random.split(key, 5)

    B = 2
    num_channels = 84
    interm_dim = 128

    # Deterministic synthetic parameters (PyTorch-Linear shapes).
    x = jax.random.normal(k_x, (B, num_channels), dtype=jnp.float32)
    w1 = jax.random.normal(k_w1, (interm_dim, num_channels), dtype=jnp.float32) * 0.1
    b1 = jax.random.normal(k_b1, (interm_dim,), dtype=jnp.float32) * 0.1
    w2 = jax.random.normal(k_w2, (1, interm_dim), dtype=jnp.float32) * 0.1
    b2 = jax.random.normal(k_b2, (1,), dtype=jnp.float32) * 0.1

    out = lossnet_mnist_forward(x, w1, b1, w2, b2)
    out = jax.block_until_ready(out)

    ref = lossnet_mnist_ref(x, w1, b1, w2, b2)
    assert out.shape == (B, 1), out.shape
    # All-f32 path now; only MXU rounding differences remain.
    assert jnp.allclose(out, ref, atol=1e-2, rtol=1e-2), (out, ref)

    print("KERNEL_OK")
</pallas_src>

<mosaic_0001>
module attributes {stable_mosaic.version = 11 : i64} {
  func.func @lossnet_kernel(%arg0: i32, %arg1: memref<8x84xf32, #tpu.memory_space<vmem>>, %arg2: memref<84x128xf32, #tpu.memory_space<vmem>>, %arg3: memref<1x128xf32, #tpu.memory_space<vmem>>, %arg4: memref<1x128xf32, #tpu.memory_space<vmem>>, %arg5: memref<1xf32, #tpu.memory_space<smem>>, %arg6: memref<8x1xf32, #tpu.memory_space<vmem>>) attributes {dimension_semantics = [#tpu.dimension_semantics<parallel>], iteration_bounds = array<i64: 1>, scalar_prefetch = 0 : i64, scratch_operands = 0 : i64, tpu.core_type = #tpu.core_type<tc>, window_params = [{transform_indices = @transform_0, window_bounds = array<i64: 8, 84>}, {pipeline_mode = #tpu.pipeline_mode<synchronous>, transform_indices = @transform_1, window_bounds = array<i64: 84, 128>}, {pipeline_mode = #tpu.pipeline_mode<synchronous>, transform_indices = @transform_2, window_bounds = array<i64: 1, 128>}, {pipeline_mode = #tpu.pipeline_mode<synchronous>, transform_indices = @transform_3, window_bounds = array<i64: 1, 128>}, {transform_indices = @transform_4, window_bounds = array<i64: 1>}, {transform_indices = @transform_5, window_bounds = array<i64: 8, 1>}]} {
    %c0 = arith.constant 0 : index
    %c0_0 = arith.constant 0 : index
    %0 = vector.load %arg1[%c0, %c0_0] : memref<8x84xf32, #tpu.memory_space<vmem>>, vector<8x84xf32>
    %c0_1 = arith.constant 0 : index
    %c0_2 = arith.constant 0 : index
    %1 = vector.load %arg2[%c0_1, %c0_2] : memref<84x128xf32, #tpu.memory_space<vmem>>, vector<84x128xf32>
    %cst = arith.constant dense<0.000000e+00> : vector<8x128xf32>
    %2 = tpu.matmul %0, %1, %cst {dimension_numbers = #tpu.dot_dimension_numbers<[1], [0], [0], [1], [0, 0, 1, 1], [], []>} : vector<8x84xf32>, vector<84x128xf32>, vector<8x128xf32> -> vector<8x128xf32>
    %c0_3 = arith.constant 0 : index
    %c0_4 = arith.constant 0 : index
    %3 = vector.load %arg3[%c0_3, %c0_4] : memref<1x128xf32, #tpu.memory_space<vmem>>, vector<1x128xf32>
    %4 = vector.broadcast %3 : vector<1x128xf32> to vector<8x128xf32>
    %5 = arith.addf %2, %4 : vector<8x128xf32>
    %cst_5 = arith.constant 0.000000e+00 : f32
    %6 = vector.broadcast %cst_5 : f32 to vector<8x128xf32>
    %7 = arith.maximumf %5, %6 : vector<8x128xf32>
    %c0_6 = arith.constant 0 : index
    %c0_7 = arith.constant 0 : index
    %8 = vector.load %arg4[%c0_6, %c0_7] : memref<1x128xf32, #tpu.memory_space<vmem>>, vector<1x128xf32>
    %9 = vector.broadcast %8 : vector<1x128xf32> to vector<8x128xf32>
    %10 = arith.mulf %7, %9 : vector<8x128xf32>
    %cst_8 = arith.constant dense<0.000000e+00> : vector<8xf32>
    %11 = vector.multi_reduction <add>, %10, %cst_8 [1] : vector<8x128xf32> to vector<8xf32>
    %12 = vector.shape_cast %11 : vector<8xf32> to vector<8x1xf32>
    %c0_9 = arith.constant 0 : index
    %13 = memref.load %arg5[%c0_9] : memref<1xf32, #tpu.memory_space<smem>>
    %14 = vector.broadcast %13 : f32 to vector<8x1xf32>
    %15 = arith.addf %12, %14 : vector<8x1xf32>
    %c0_10 = arith.constant 0 : index
    %c0_11 = arith.constant 0 : index
    %16 = vector.load %arg6[%c0_10, %c0_11] : memref<8x1xf32, #tpu.memory_space<vmem>>, vector<8x1xf32>
    tpu.vector_store %arg6[%c0_10, %c0_11], %15 {strides = array<i32>} : memref<8x1xf32, #tpu.memory_space<vmem>>, vector<8x1xf32>,
    return
  }
  func.func @transform_0(%arg0: i32) -> (i32, i32) {
    %c0_i32 = arith.constant 0 : i32
    %c0_i32_0 = arith.constant 0 : i32
    return %arg0, %c0_i32 : i32, i32
  }
  func.func @transform_1(%arg0: i32) -> (i32, i32) {
    %c0_i32 = arith.constant 0 : i32
    %c0_i32_0 = arith.constant 0 : i32
    %c0_i32_1 = arith.constant 0 : i32
    return %c0_i32, %c0_i32_0 : i32, i32
  }
  func.func @transform_2(%arg0: i32) -> (i32, i32) {
    %c0_i32 = arith.constant 0 : i32
    %c0_i32_0 = arith.constant 0 : i32
    %c0_i32_1 = arith.constant 0 : i32
    return %c0_i32, %c0_i32_0 : i32, i32
  }
  func.func @transform_3(%arg0: i32) -> (i32, i32) {
    %c0_i32 = arith.constant 0 : i32
    %c0_i32_0 = arith.constant 0 : i32
    %c0_i32_1 = arith.constant 0 : i32
    return %c0_i32, %c0_i32_0 : i32, i32
  }
  func.func @transform_4(%arg0: i32) -> i32 {
    %c0_i32 = arith.constant 0 : i32
    %c0_i32_0 = arith.constant 0 : i32
    return %c0_i32 : i32
  }
  func.func @transform_5(%arg0: i32) -> (i32, i32) {
    %c0_i32 = arith.constant 0 : i32
    %c0_i32_0 = arith.constant 0 : i32
    return %arg0, %c0_i32 : i32, i32
  }
}

</mosaic_0001>

<llo_original>
// kernel: tpu_custom_call.1
$region0: #{tpu_custom_call.1}
  #allocation0 [shape = 'u32[]', space=smem, size = 0x4, offset = 0x4, fixed_abs, tag = 'smem constant byte address 0x4 - core index']
  #allocation1 [shape = 'u32[72,128]{1,0:T(1,128)}', space=vmem, size = 0x9000, scoped, tag = 'internal scratch']
  #allocation2 [shape = 'f32[1]{0:T(128)S(6)}', space=smem, size = 0x200, scoped, tag = 'scoped memory for tpu_custom_call.1']
  %s0 = inlined_call_operand.hbm [shape: f32[8,84], index: 0, kind: input, shape index: {}]
  %s1 = inlined_call_operand.hbm [shape: f32[84,128], index: 1, kind: input, shape index: {}]
  %s2 = inlined_call_operand.vmem [shape: f32[1,128], index: 2, kind: input, shape index: {}]
  %s3 = inlined_call_operand.vmem [shape: f32[1,128], index: 3, kind: input, shape index: {}]
  %s4 = inlined_call_operand.<no memory space> [shape: f32[1], index: 4, kind: input, shape index: {}]
  %s5 = inlined_call_operand.vmem [shape: f32[8,1], index: 5, kind: output, shape index: {}]
  %s6 = sld [smem:[#allocation0]]
  $region38: #{tpu_custom_call.1} parent=0
    _
  %s8 = ssub.s32 1, %s6
  %s9 = scalar_select 0, %s8, %s6
  %10 = sst [smem:[#allocation2]] %s4
  $region1: #{tpu_custom_call.1} parent=0
    #allocation3 [shape = 'u8[4096]{0}', space=vmem, size = 0x1000, scoped, tag = 'input window, operand 0, single buffered']
    #allocation4 [shape = 's32[1]{0}', space=sflag, size = 0x4, scoped, tag = 'scoped memory for tpu_custom_call.1']
    #allocation5 [shape = 'u8[45056]{0}', space=vmem, size = 0xb000, scoped, tag = 'input window, operand 1, single buffered']
    #allocation6 [shape = 's32[1]{0}', space=sflag, size = 0x4, scoped, tag = 'scoped memory for tpu_custom_call.1']
    %11 = vsyncpa [#allocation4], 0
    %12 = vsyncpa [#allocation6], 0
    // Predicated region
    $region2: #{tpu_custom_call.1} parent=1 // pred_check
      _
    $region3: #{tpu_custom_call.1} parent=1 // pred_check_branch
      %14 = sbr.rel (0) target = $region5
    $region4: #{tpu_custom_call.1} parent=1 // pred_region
      %16 = vsyncadd [#allocation4], 0
      %s18 = sshll.u32 %s0, 4
      %s19 = int_to_ptr.hbm [resolvable:$true] %s18
      %s20 = sshll.u32 [#allocation3], 4
      %s21 = int_to_ptr.vmem [resolvable:$true] %s20
      %23 = dma.hbm_to_vmem [thread:$0]  %s19, 128, %s21, [#allocation4]
    $region5: #{tpu_custom_call.1} parent=1 // pred_fallthru
      _
    // Predicated region
    $region6: #{tpu_custom_call.1} parent=1 // pred_check
      _
    $region7: #{tpu_custom_call.1} parent=1 // pred_check_branch
      %25 = sbr.rel (0) target = $region9
    $region8: #{tpu_custom_call.1} parent=1 // pred_region
      %27 = vsyncadd [#allocation6], 0
      %s28 = sshll.u32 %s1, 4
      %s29 = int_to_ptr.hbm [resolvable:$true] %s28
      %s30 = sshll.u32 [#allocation5], 4
      %s31 = int_to_ptr.vmem [resolvable:$true] %s30
      %36 = dma.hbm_to_vmem [thread:$0]  %s29, 1408, %s31, [#allocation6], 128, 128, 8
    $region9: #{tpu_custom_call.1} parent=1 // pred_fallthru
      _
    // Predicated region
    $region10: #{tpu_custom_call.1} parent=1 // pred_check
      _
    $region11: #{tpu_custom_call.1} parent=1 // pred_check_branch
      %38 = sbr.rel (0) target = $region13
    $region12: #{tpu_custom_call.1} parent=1 // pred_region
      _
    $region13: #{tpu_custom_call.1} parent=1 // pred_fallthru
      _
    // Predicated region
    $region14: #{tpu_custom_call.1} parent=1 // pred_check
      _
    $region15: #{tpu_custom_call.1} parent=1 // pred_check_branch
      %40 = sbr.rel (0) target = $region17
    $region16: #{tpu_custom_call.1} parent=1 // pred_region
      _
    $region17: #{tpu_custom_call.1} parent=1 // pred_fallthru
      _
    // Predicated region
    $region18: #{tpu_custom_call.1} parent=1 // pred_check
      _
    $region19: #{tpu_custom_call.1} parent=1 // pred_check_branch
      %42 = sbr.rel (0) target = $region21
    $region20: #{tpu_custom_call.1} parent=1 // pred_region
      _
    $region21: #{tpu_custom_call.1} parent=1 // pred_fallthru
      _
    // Predicated region
    $region22: #{tpu_custom_call.1} parent=1 // pred_check
      _
    $region23: #{tpu_custom_call.1} parent=1 // pred_check_branch
      %44 = sbr.rel (0) target = $region25
    $region24: #{tpu_custom_call.1} parent=1 // pred_region
      %46 = dma.done [#allocation4], 128
    $region25: #{tpu_custom_call.1} parent=1 // pred_fallthru
      _
    // Predicated region
    $region26: #{tpu_custom_call.1} parent=1 // pred_check
      _
    $region27: #{tpu_custom_call.1} parent=1 // pred_check_branch
      %48 = sbr.rel (0) target = $region29
    $region28: #{tpu_custom_call.1} parent=1 // pred_region
      %50 = dma.done [#allocation6], 1408
    $region29: #{tpu_custom_call.1} parent=1 // pred_fallthru
      _
    %v51 = vld [vmem:[#allocation3] sm:$0xff]
    %v52 = vld [vmem:[#allocation5] sm:$0xff]
    %v53 = vld [vmem:[#allocation5 + $0x8] sm:$0xff]
    %v54 = vld [vmem:[#allocation5 + $0x10] sm:$0xff]
    %v55 = vld [vmem:[#allocation5 + $0x18] sm:$0xff]
    %v56 = vld [vmem:[#allocation5 + $0x20] sm:$0xff]
    %v57 = vld [vmem:[#allocation5 + $0x28] sm:$0xff]
    %v58 = vld [vmem:[#allocation5 + $0x30] sm:$0xff]
    %v59 = vld [vmem:[#allocation5 + $0x38] sm:$0xff]
    %v60 = vld [vmem:[#allocation5 + $0x40] sm:$0xff]
    %v61 = vld [vmem:[#allocation5 + $0x48] sm:$0xff]
    %v62 = vld [vmem:[#allocation5 + $0x50] sm:$0xf]
    %v63 = vld [vmem:[%s2] sm:$0x1]
    %v65 = vperm.slane %v63, 0
    %vm67 = vcmask 687104
    %v69 = vsel %vm67, %v51, 0
    %vm71 = vcmask 1043456
    %v73 = vsel %vm71, %v62, 0
    %75 = vmatpush.msra.mxu0 0.0
    %76 = vmatpush.msra.mxu0 0.0
    %77 = vmatpush.msra.mxu0 0.0
    %78 = vmatpush.msra.mxu0 0.0
    %79 = vmatpush.msra.mxu0 0.0
    %80 = vmatpush.msra.mxu0 %v73
    %81 = vmatpush.msra.mxu0 %v61
    %82 = vmatpush.msra.mxu0 %v60
    %83 = vmatpush.msra.mxu0 %v59
    %84 = vmatpush.msra.mxu0 %v58
    %85 = vmatpush.msra.mxu0 %v57
    %86 = vmatpush.msra.mxu0 %v56
    %87 = vmatpush.msra.mxu0 %v55
    %88 = vmatpush.msra.mxu0 %v54
    %89 = vmatpush.msra.mxu0 %v53
    %90 = vmatpush.msra.mxu0 %v52
    %91 = vmatmul.f32.gmra.mxu0 %v69
    %v92 = vpop.f32.mrf.mxu0
    %v93 = vadd.f32 %v65, %v92
    %94 = vdwg.mxu0
    %v95 = vmax.f32 %v93, 0.0
    %v96 = vld [vmem:[%s3] sm:$0x1]
    %v98 = vperm.slane %v96, 0
    %v100 = vmul.f32 %v95, %v98
    %101 = vadd.xlane.f32.xlu0 %v100
    %v102 = vpop.xlane.xlu0 %101
    %s103 = sld [smem:[#allocation2]]
    %v104 = vstv %s103
    %v105 = vadd.f32 %v102, %v104
    %vm106 = vcmask 7168
    %107 = vst.msk [vmem:[%s5] sm:$0xff] %vm106, %v105
    // Predicated region
    $region30: #{tpu_custom_call.1} parent=1 // pred_check
      _
    $region31: #{tpu_custom_call.1} parent=1 // pred_check_branch
      %109 = sbr.rel (0) target = $region33
    $region32: #{tpu_custom_call.1} parent=1 // pred_region
      _
    $region33: #{tpu_custom_call.1} parent=1 // pred_fallthru
      _
    // Predicated region
    $region34: #{tpu_custom_call.1} parent=1 // pred_check
      _
    $region35: #{tpu_custom_call.1} parent=1 // pred_check_branch
      %111 = sbr.rel (0) target = $region37
    $region36: #{tpu_custom_call.1} parent=1 // pred_region
      _
    $region37: #{tpu_custom_call.1} parent=1 // pred_fallthru
      _
    %112 = vsyncpa [#allocation4], 1
    %113 = vsyncpa [#allocation6], 1

</llo_original>
